<compile_context>
chip_gen: v5e
topology: v5e:2x2
jax: 0.10.0
libtpu: 0.0.40
codegen_flags: <defaults>
</compile_context>

<pallas_src>
import numpy as np
import jax
import jax.numpy as jnp
from jax import lax
from jax.experimental import pallas as pl
from jax.experimental.pallas import tpu as pltpu

L = 7            # inhibition window size (module default l=7)
PAD = L // 2
A_COEF = 0.1     # module default a
B_COEF = 0.9     # module default b


# ---- deterministic buffer init (same math as the PyTorch module) -------------
def mex_hat(d):
    grid = (np.mgrid[:d, :d] - d // 2) * 1.0
    eucl_grid = (grid ** 2).sum(0) ** 0.5
    eucl_grid /= d
    return eucl_grid * np.exp(-eucl_grid)


def mex_hat_pitch(d):
    grid = (np.mgrid[:d, :d] - d // 2) * 1.0
    eucl_grid = (grid[0] ** 2) ** 0.5
    eucl_grid /= d
    return eucl_grid * np.exp(-eucl_grid)


def _round_up(x, m):
    return (x + m - 1) // m * m


# ---- weight grouping (trace-time, weights are a fixed buffer) -----------------
def _build_groups(w_flat_np):
    w2 = np.asarray(w_flat_np, np.float32).reshape(L, L)
    by_val = {}
    for ki in range(L):
        for kj in range(L):
            wv = float(w2[ki, kj])
            if wv == 0.0:
                continue                       # center tap of mex_hat is 0 -> skip
            by_val.setdefault(wv, []).append((ki, kj - PAD))
    glist = sorted(by_val.items())             # [(weight, [(ki, dj), ...]), ...]
    row_taps = [[] for _ in range(L)]          # per-row (dj, group_idx), ki-major
    for gi, (_, taps) in enumerate(glist):
        for ki, dj in taps:
            row_taps[ki].append((dj, gi))
    w_sum = float(np.float64(w2).sum())
    return glist, row_taps, w_sum


# ---- pass 1: avg / diff / per-tile sum-of-squares ------------------------------
def _make_pass1_kernel(glist, row_taps, w_sum, tile_r, lanes, n_rows_valid):
    tile_halo = tile_r + 8
    n_groups = len(glist)
    neg_inv_l2 = -1.0 / float(L * L)

    def kernel(lmask_ref, xp_hbm, avg_ref, diff_ref, ssq_ref, xbuf, sem):
        i = pl.program_id(0)
        nt = pl.num_programs(0)
        slot = i % 2

        def start_fetch(t, s_idx):
            row0 = pl.multiple_of(t * tile_r, 8)
            pltpu.make_async_copy(xp_hbm.at[pl.ds(row0, tile_halo)],
                                  xbuf.at[s_idx], sem.at[s_idx]).start()

        @pl.when(i == 0)
        def _():
            start_fetch(i, slot)               # prime the pipeline (i == 0 here)

        pltpu.make_async_copy(xp_hbm.at[pl.ds(0, tile_halo)],
                              xbuf.at[slot], sem.at[slot]).wait()

        @pl.when(i + 1 < nt)
        def _():
            start_fetch(i + 1, 1 - slot)       # prefetch next tile's halo window

        cur = xbuf.at[slot]                    # (tile_halo, lanes) VMEM view

        def slab(ki):                          # rows [ki, ki + tile_r) of the window
            return cur[ki:ki + tile_r, :]

        def hshift(v, d):                      # result[:, c] = v[:, c + d]
            if d == 0:
                return v
            return pltpu.roll(v, shift=(-d) % lanes, axis=1)

        x = slab(PAD)                          # center pixels (output-aligned)

        # Fused pass over the 7 row slabs: vertical box accumulation + grouped
        # differential taps (max(p, x) summed per equal-weight group).
        rsum = None
        gacc = [None] * n_groups
        for ki in range(L):
            s = x if ki == PAD else slab(ki)
            rsum = s if rsum is None else rsum + s
            for dj, gi in row_taps[ki]:
                t = jnp.maximum(hshift(s, dj), x)
                gacc[gi] = t if gacc[gi] is None else gacc[gi] + t

        # diff = sum_g w_g * sum_{k in g} max(p_k, x)  -  x * sum(w)
        diff = x * (-w_sum)
        for gi, (wv, _) in enumerate(glist):
            diff = diff + wv * gacc[gi]

        # 7-wide horizontal box sum via a shift tree (5 rolls, 4 adds).
        a2 = rsum + hshift(rsum, 1)                              # taps {0, 1}
        a4 = a2 + hshift(a2, 2)                                  # taps {0..3}
        box = hshift(a4, -3) + hshift(a2, 1) + hshift(rsum, 3)   # taps {-3..3}
        avg = jnp.exp(box * neg_inv_l2)                          # exp(-mean of 49)

        avg_ref[...] = avg
        diff_ref[...] = diff

        # Per-tile sum of squares of the suppression term over valid pixels only
        # (lane mask is resident; row validity from an iota vs the true H).
        lane_m = lmask_ref[0:1, :]
        row_id = lax.broadcasted_iota(jnp.int32, (tile_r, lanes), 0) + i * tile_r
        valid = jnp.where(row_id < n_rows_valid, lane_m, 0.0)
        sup = (A_COEF * avg + B_COEF * diff) * valid
        ssq = jnp.sum(sup * sup)
        ssq_ref[...] = jnp.broadcast_to(ssq, (8, 128)).astype(jnp.float32)

    return kernel


# ---- pass 2: normalized threshold -> suppression mask --------------------------
def _pass2_kernel(inv_ref, x_ref, avg_ref, diff_ref, mask_ref):
    inv = inv_ref[0]
    sup = A_COEF * avg_ref[...] + B_COEF * diff_ref[...]
    mask_ref[...] = jnp.where(x_ref[...] > sup * inv, 1.0, 0.0).astype(jnp.float32)


# ---- wrapper --------------------------------------------------------------------
def _pick_tile_r(H, lanes):
    # ~22 live slab-rows of f32 per output row (double-buffered halo input,
    # 2 double-buffered outputs, 9 group accumulators + misc); target <=12 MiB.
    budget = 12 * 1024 * 1024
    per_row = lanes * 4 * 22
    t = (budget // per_row) // 8 * 8
    t = max(8, min(256, t))
    return int(min(t, _round_up(H, 8)))


def lateral_inhibition(x, w_flat, *, tile_r=None):
    """x: (B, 1, H, W) float32; w_flat: (L*L,) concrete weights (numpy or jnp).
    Returns (suppression_mask, average_term, differential_term), each (B,1,H,W)."""
    Bn, C, H, W = x.shape
    assert C == 1
    xs = x[:, 0, :, :].astype(jnp.float32)                     # (B, H, W)

    Wp = W + 2 * PAD                                            # per-image padded width
    lanes_used = Bn * Wp
    LANES = _round_up(max(lanes_used, 128), 128)                # lane-dense last dim

    if tile_r is None:
        tile_r = _pick_tile_r(H, LANES)
    assert tile_r % 8 == 0 and tile_r >= 8
    ntiles = pl.cdiv(H, tile_r)
    h_pad = ntiles * tile_r                                     # padded output rows
    tile_halo = tile_r + 8

    # Zero-pad each image with its own gutter, lay images side-by-side along the
    # lane axis, pad rows so every halo window stays in-bounds, pad lanes to 128k.
    xp = jnp.pad(xs, ((0, 0), (PAD, h_pad + 8 - H - PAD), (PAD, PAD)))  # (B,h_pad+8,Wp)
    xp = jnp.transpose(xp, (1, 0, 2)).reshape(h_pad + 8, lanes_used)
    xp = jnp.pad(xp, ((0, 0), (0, LANES - lanes_used)))                 # (h_pad+8,LANES)

    # Small resident lane-validity mask (valid = non-gutter, non-padding lanes).
    lm = np.zeros((8, LANES), np.float32)
    for b in range(Bn):
        lm[:, b * Wp + PAD: b * Wp + PAD + W] = 1.0
    lmask = jnp.asarray(lm)

    glist, row_taps, w_sum = _build_groups(np.asarray(w_flat, np.float32))
    kernel1 = _make_pass1_kernel(glist, row_taps, w_sum, tile_r, LANES, H)

    avg_s, diff_s, ssq_s = pl.pallas_call(
        kernel1,
        out_shape=(
            jax.ShapeDtypeStruct((h_pad, LANES), jnp.float32),
            jax.ShapeDtypeStruct((h_pad, LANES), jnp.float32),
            jax.ShapeDtypeStruct((ntiles * 8, 128), jnp.float32),
        ),
        grid_spec=pltpu.PrefetchScalarGridSpec(
            num_scalar_prefetch=0,
            grid=(ntiles,),
            in_specs=[
                pl.BlockSpec((8, LANES), lambda i: (0, 0)),        # lane mask (resident)
                pl.BlockSpec(memory_space=pl.ANY),                 # padded slab in HBM
            ],
            out_specs=[
                pl.BlockSpec((tile_r, LANES), lambda i: (i, 0)),   # average term
                pl.BlockSpec((tile_r, LANES), lambda i: (i, 0)),   # differential term
                pl.BlockSpec((8, 128), lambda i: (i, 0)),          # per-tile sum-of-squares
            ],
            scratch_shapes=[
                pltpu.VMEM((2, tile_halo, LANES), jnp.float32),    # halo double buffer
                pltpu.SemaphoreType.DMA((2,)),
            ],
        ),
        compiler_params=pltpu.CompilerParams(
            dimension_semantics=("arbitrary",),          # cross-iteration manual prefetch
            vmem_limit_bytes=32 * 1024 * 1024,
        ),
    )(lmask, xp)

    # Global L2 norm (exactly 1/sqrt(sum over all valid pixels)); a>0 => sum>0.
    ssq_total = ssq_s.reshape(ntiles, 8, 128)[:, 0, 0].sum()
    inv_arr = (1.0 / jnp.sqrt(ssq_total)).reshape(1).astype(jnp.float32)

    xc = xp[PAD:PAD + h_pad, :]                 # center-aligned x, same packed layout

    mask_s = pl.pallas_call(
        _pass2_kernel,
        out_shape=jax.ShapeDtypeStruct((h_pad, LANES), jnp.float32),
        grid_spec=pltpu.PrefetchScalarGridSpec(
            num_scalar_prefetch=0,
            grid=(ntiles,),
            in_specs=[
                pl.BlockSpec(memory_space=pltpu.MemorySpace.SMEM),  # 1/||sup||
                pl.BlockSpec((tile_r, LANES), lambda i: (i, 0)),    # x
                pl.BlockSpec((tile_r, LANES), lambda i: (i, 0)),    # avg
                pl.BlockSpec((tile_r, LANES), lambda i: (i, 0)),    # diff
            ],
            out_specs=pl.BlockSpec((tile_r, LANES), lambda i: (i, 0)),
        ),
        compiler_params=pltpu.CompilerParams(
            dimension_semantics=("parallel",),
            vmem_limit_bytes=32 * 1024 * 1024,
        ),
    )(inv_arr, xc, avg_s, diff_s)

    def unpack(o):
        o = o[:H, :lanes_used].reshape(H, Bn, Wp)[:, :, PAD:PAD + W]   # (H, B, W)
        return jnp.transpose(o, (1, 0, 2))[:, None]                     # (B, 1, H, W)

    return unpack(mask_s), unpack(avg_s), unpack(diff_s)


# ---- pure-numpy reference (mirrors the PyTorch forward, in float64) -------------
def _ref_forward(x_np, w_np, a=A_COEF, b=B_COEF):
    Bn, C, H, W = x_np.shape
    xp = np.pad(x_np[:, 0], ((0, 0), (PAD, PAD), (PAD, PAD)))
    avg = np.zeros((Bn, H, W), np.float64)
    diff = np.zeros((Bn, H, W), np.float64)
    for bi in range(Bn):
        for i in range(H):
            for j in range(W):
                patch = xp[bi, i:i + L, j:j + L].reshape(-1)
                avg[bi, i, j] = np.exp(-patch.mean())
                diff[bi, i, j] = (w_np * np.maximum(patch - x_np[bi, 0, i, j], 0.0)).sum()
    sup = a * avg + b * diff
    sup_n = sup / np.sqrt((sup ** 2).sum())
    mask = (x_np[:, 0] > sup_n).astype(np.float32)
    return mask[:, None], avg[:, None], diff[:, None], sup_n[:, None]


if __name__ == "__main__":
    key = jax.random.PRNGKey(0)
    Bn, H, W = 2, 1, 16  # placeholder, real shapes below
    Bn, H, W = 2, 16, 16
    x = jax.random.uniform(key, (Bn, 1, H, W), dtype=jnp.float32)

    # mex_='1' variant (mex_hat), flattened row-major exactly like .view(1,1,1,-1)
    w_flat = np.asarray(mex_hat(L).reshape(-1), dtype=np.float32)

    # tile_r=8 so the 2-tile halo/prefetch path is exercised at this small size.
    mask, avg, diff = lateral_inhibition(x, w_flat, tile_r=8)
    jax.block_until_ready((mask, avg, diff))

    # sanity-check against a straightforward float64 numpy implementation
    xr = np.asarray(x, dtype=np.float64)
    wr = np.asarray(w_flat, dtype=np.float64)
    m_ref, a_ref, d_ref, supn_ref = _ref_forward(xr, wr)

    np.testing.assert_allclose(np.asarray(avg), a_ref, rtol=1e-4, atol=1e-4)
    np.testing.assert_allclose(np.asarray(diff), d_ref, rtol=1e-4, atol=1e-4)

    # The mask is a strict float compare; ignore pixels sitting within a tiny
    # band of the threshold (fp reassociation may legitimately flip those).
    borderline = np.abs(xr - supn_ref) < 1e-4
    mismatch = (np.asarray(mask) != m_ref) & (~borderline)
    assert not mismatch.any(), f"{int(mismatch.sum())} non-borderline mask mismatches"

    print("KERNEL_OK")
</pallas_src>

<mosaic_0001>
module attributes {stable_mosaic.version = 11 : i64} {
  func.func @kernel(%arg0: i32, %arg1: memref<8x128xf32, #tpu.memory_space<vmem>>, %arg2: memref<24x128xf32, #tpu.memory_space<any>>, %arg3: memref<8x128xf32, #tpu.memory_space<vmem>>, %arg4: memref<8x128xf32, #tpu.memory_space<vmem>>, %arg5: memref<8x128xf32, #tpu.memory_space<vmem>>, %arg6: memref<2x16x128xf32, #tpu.memory_space<vmem>>, %arg7: memref<2x!tpu.dma_semaphore, #tpu.memory_space<semaphore_mem>>) attributes {dimension_semantics = [#tpu.dimension_semantics<arbitrary>], iteration_bounds = array<i64: 2>, scalar_prefetch = 0 : i64, scratch_operands = 2 : i64, tpu.core_type = #tpu.core_type<tc>, window_params = [{pipeline_mode = #tpu.pipeline_mode<synchronous>, transform_indices = @transform_0, window_bounds = array<i64: 8, 128>}, {}, {transform_indices = @transform_2, window_bounds = array<i64: 8, 128>}, {transform_indices = @transform_3, window_bounds = array<i64: 8, 128>}, {transform_indices = @transform_4, window_bounds = array<i64: 8, 128>}]} {
    %c2_i32 = arith.constant 2 : i32
    %c0_i32 = arith.constant 0 : i32
    %0 = arith.cmpi eq, %c2_i32, %c0_i32 : i32
    %c1_i32 = arith.constant 1 : i32
    %1 = arith.select %0, %c1_i32, %c2_i32 : i32
    %2 = arith.remsi %arg0, %1 : i32
    %c0_i32_0 = arith.constant 0 : i32
    %3 = arith.cmpi ne, %2, %c0_i32_0 : i32
    %c0_i32_1 = arith.constant 0 : i32
    %4 = arith.cmpi slt, %2, %c0_i32_1 : i32
    %c0_i32_2 = arith.constant 0 : i32
    %5 = arith.cmpi slt, %1, %c0_i32_2 : i32
    %6 = arith.xori %4, %5 : i1
    %7 = arith.andi %6, %3 : i1
    %8 = arith.addi %2, %1 : i32
    %9 = arith.select %7, %8, %2 : i32
    %c0_i32_3 = arith.constant 0 : i32
    %10 = arith.cmpi eq, %arg0, %c0_i32_3 : i32
    %11 = arith.extui %10 : i1 to i32
    %c0_i32_4 = arith.constant 0 : i32
    %12 = arith.cmpi ne, %11, %c0_i32_4 : i32
    scf.if %12 {
      %c8_i32_98 = arith.constant 8 : i32
      %245 = arith.muli %arg0, %c8_i32_98 : i32
      %246 = tpu.assume_multiple %245, 8 : i32
      %c0_i32_99 = arith.constant 0 : i32
      %247 = tpu.memref_slice %arg2[%246, %c0_i32_99] : memref<24x128xf32, #tpu.memory_space<any>> -> memref<16x128xf32, #tpu.memory_space<any>>
      %c0_i32_100 = arith.constant 0 : i32
      %c0_i32_101 = arith.constant 0 : i32
      %248 = tpu.memref_slice %arg6[%9, %c0_i32_100, %c0_i32_101] : memref<2x16x128xf32, #tpu.memory_space<vmem>> -> memref<1x16x128xf32, #tpu.memory_space<vmem>>
      %249 = tpu.memref_squeeze %248 : memref<1x16x128xf32, #tpu.memory_space<vmem>> -> memref<16x128xf32, #tpu.memory_space<vmem>>
      %250 = tpu.memref_slice %arg7[%9] : memref<2x!tpu.dma_semaphore, #tpu.memory_space<semaphore_mem>> -> memref<1x!tpu.dma_semaphore, #tpu.memory_space<semaphore_mem>>
      %251 = tpu.memref_squeeze %250 : memref<1x!tpu.dma_semaphore, #tpu.memory_space<semaphore_mem>> -> memref<!tpu.dma_semaphore, #tpu.memory_space<semaphore_mem>>
      tpu.enqueue_dma source(%247 : memref<16x128xf32, #tpu.memory_space<any>>) target(%249 : memref<16x128xf32, #tpu.memory_space<vmem>>) target_semaphore(%251 : memref<!tpu.dma_semaphore, #tpu.memory_space<semaphore_mem>>)
    } else {
    }
    %c0_i32_5 = arith.constant 0 : i32
    %c0_i32_6 = arith.constant 0 : i32
    %13 = tpu.memref_slice %arg2[%c0_i32_5, %c0_i32_6] : memref<24x128xf32, #tpu.memory_space<any>> -> memref<16x128xf32, #tpu.memory_space<any>>
    %c0_i32_7 = arith.constant 0 : i32
    %c0_i32_8 = arith.constant 0 : i32
    %14 = tpu.memref_slice %arg6[%9, %c0_i32_7, %c0_i32_8] : memref<2x16x128xf32, #tpu.memory_space<vmem>> -> memref<1x16x128xf32, #tpu.memory_space<vmem>>
    %15 = tpu.memref_squeeze %14 : memref<1x16x128xf32, #tpu.memory_space<vmem>> -> memref<16x128xf32, #tpu.memory_space<vmem>>
    %16 = tpu.memref_slice %arg7[%9] : memref<2x!tpu.dma_semaphore, #tpu.memory_space<semaphore_mem>> -> memref<1x!tpu.dma_semaphore, #tpu.memory_space<semaphore_mem>>
    %17 = tpu.memref_squeeze %16 : memref<1x!tpu.dma_semaphore, #tpu.memory_space<semaphore_mem>> -> memref<!tpu.dma_semaphore, #tpu.memory_space<semaphore_mem>>
    tpu.wait_dma2 semaphore(%17 : memref<!tpu.dma_semaphore, #tpu.memory_space<semaphore_mem>>) src(%13 : memref<16x128xf32, #tpu.memory_space<any>>) dst(%15 : memref<16x128xf32, #tpu.memory_space<vmem>>)
    %c1_i32_9 = arith.constant 1 : i32
    %18 = arith.addi %arg0, %c1_i32_9 : i32
    %c2_i32_10 = arith.constant 2 : i32
    %19 = arith.cmpi slt, %18, %c2_i32_10 : i32
    %20 = arith.extui %19 : i1 to i32
    %c0_i32_11 = arith.constant 0 : i32
    %21 = arith.cmpi ne, %20, %c0_i32_11 : i32
    scf.if %21 {
      %c1_i32_98 = arith.constant 1 : i32
      %245 = arith.addi %arg0, %c1_i32_98 : i32
      %c1_i32_99 = arith.constant 1 : i32
      %246 = arith.subi %c1_i32_99, %9 : i32
      %c8_i32_100 = arith.constant 8 : i32
      %247 = arith.muli %245, %c8_i32_100 : i32
      %248 = tpu.assume_multiple %247, 8 : i32
      %c0_i32_101 = arith.constant 0 : i32
      %249 = tpu.memref_slice %arg2[%248, %c0_i32_101] : memref<24x128xf32, #tpu.memory_space<any>> -> memref<16x128xf32, #tpu.memory_space<any>>
      %c0_i32_102 = arith.constant 0 : i32
      %c0_i32_103 = arith.constant 0 : i32
      %250 = tpu.memref_slice %arg6[%246, %c0_i32_102, %c0_i32_103] : memref<2x16x128xf32, #tpu.memory_space<vmem>> -> memref<1x16x128xf32, #tpu.memory_space<vmem>>
      %251 = tpu.memref_squeeze %250 : memref<1x16x128xf32, #tpu.memory_space<vmem>> -> memref<16x128xf32, #tpu.memory_space<vmem>>
      %252 = tpu.memref_slice %arg7[%246] : memref<2x!tpu.dma_semaphore, #tpu.memory_space<semaphore_mem>> -> memref<1x!tpu.dma_semaphore, #tpu.memory_space<semaphore_mem>>
      %253 = tpu.memref_squeeze %252 : memref<1x!tpu.dma_semaphore, #tpu.memory_space<semaphore_mem>> -> memref<!tpu.dma_semaphore, #tpu.memory_space<semaphore_mem>>
      tpu.enqueue_dma source(%249 : memref<16x128xf32, #tpu.memory_space<any>>) target(%251 : memref<16x128xf32, #tpu.memory_space<vmem>>) target_semaphore(%253 : memref<!tpu.dma_semaphore, #tpu.memory_space<semaphore_mem>>)
    } else {
    }
    %c0_i32_12 = arith.constant 0 : i32
    %c0_i32_13 = arith.constant 0 : i32
    %22 = tpu.memref_slice %arg6[%9, %c0_i32_12, %c0_i32_13] : memref<2x16x128xf32, #tpu.memory_space<vmem>> -> memref<1x16x128xf32, #tpu.memory_space<vmem>>
    %23 = tpu.memref_squeeze %22 : memref<1x16x128xf32, #tpu.memory_space<vmem>> -> memref<16x128xf32, #tpu.memory_space<vmem>>
    %c3 = arith.constant 3 : index
    %c0 = arith.constant 0 : index
    %24 = vector.load %23[%c3, %c0] : memref<16x128xf32, #tpu.memory_space<vmem>>, vector<8x128xf32>
    %c0_i32_14 = arith.constant 0 : i32
    %c0_i32_15 = arith.constant 0 : i32
    %25 = tpu.memref_slice %arg6[%9, %c0_i32_14, %c0_i32_15] : memref<2x16x128xf32, #tpu.memory_space<vmem>> -> memref<1x16x128xf32, #tpu.memory_space<vmem>>
    %26 = tpu.memref_squeeze %25 : memref<1x16x128xf32, #tpu.memory_space<vmem>> -> memref<16x128xf32, #tpu.memory_space<vmem>>
    %c0_16 = arith.constant 0 : index
    %c0_17 = arith.constant 0 : index
    %27 = vector.load %26[%c0_16, %c0_17] : memref<16x128xf32, #tpu.memory_space<vmem>>, vector<8x128xf32>
    %28 = arith.maximumf %27, %24 : vector<8x128xf32>
    %c1_i32_18 = arith.constant 1 : i32
    %29 = tpu.dynamic_rotate %27 by %c1_i32_18 dim 1 : vector<8x128xf32>, i32 -> vector<8x128xf32>
    %30 = arith.maximumf %29, %24 : vector<8x128xf32>
    %c127_i32 = arith.constant 127 : i32
    %31 = tpu.dynamic_rotate %27 by %c127_i32 dim 1 : vector<8x128xf32>, i32 -> vector<8x128xf32>
    %32 = arith.maximumf %31, %24 : vector<8x128xf32>
    %33 = arith.addf %30, %32 : vector<8x128xf32>
    %c2_i32_19 = arith.constant 2 : i32
    %34 = tpu.dynamic_rotate %27 by %c2_i32_19 dim 1 : vector<8x128xf32>, i32 -> vector<8x128xf32>
    %35 = arith.maximumf %34, %24 : vector<8x128xf32>
    %c126_i32 = arith.constant 126 : i32
    %36 = tpu.dynamic_rotate %27 by %c126_i32 dim 1 : vector<8x128xf32>, i32 -> vector<8x128xf32>
    %37 = arith.maximumf %36, %24 : vector<8x128xf32>
    %38 = arith.addf %35, %37 : vector<8x128xf32>
    %c3_i32 = arith.constant 3 : i32
    %39 = tpu.dynamic_rotate %27 by %c3_i32 dim 1 : vector<8x128xf32>, i32 -> vector<8x128xf32>
    %40 = arith.maximumf %39, %24 : vector<8x128xf32>
    %c125_i32 = arith.constant 125 : i32
    %41 = tpu.dynamic_rotate %27 by %c125_i32 dim 1 : vector<8x128xf32>, i32 -> vector<8x128xf32>
    %42 = arith.maximumf %41, %24 : vector<8x128xf32>
    %43 = arith.addf %40, %42 : vector<8x128xf32>
    %c0_i32_20 = arith.constant 0 : i32
    %c0_i32_21 = arith.constant 0 : i32
    %44 = tpu.memref_slice %arg6[%9, %c0_i32_20, %c0_i32_21] : memref<2x16x128xf32, #tpu.memory_space<vmem>> -> memref<1x16x128xf32, #tpu.memory_space<vmem>>
    %45 = tpu.memref_squeeze %44 : memref<1x16x128xf32, #tpu.memory_space<vmem>> -> memref<16x128xf32, #tpu.memory_space<vmem>>
    %c1 = arith.constant 1 : index
    %c0_22 = arith.constant 0 : index
    %46 = vector.load %45[%c1, %c0_22] : memref<16x128xf32, #tpu.memory_space<vmem>>, vector<8x128xf32>
    %47 = arith.addf %27, %46 : vector<8x128xf32>
    %48 = arith.maximumf %46, %24 : vector<8x128xf32>
    %c1_i32_23 = arith.constant 1 : i32
    %49 = tpu.dynamic_rotate %46 by %c1_i32_23 dim 1 : vector<8x128xf32>, i32 -> vector<8x128xf32>
    %50 = arith.maximumf %49, %24 : vector<8x128xf32>
    %c127_i32_24 = arith.constant 127 : i32
    %51 = tpu.dynamic_rotate %46 by %c127_i32_24 dim 1 : vector<8x128xf32>, i32 -> vector<8x128xf32>
    %52 = arith.maximumf %51, %24 : vector<8x128xf32>
    %53 = arith.addf %50, %52 : vector<8x128xf32>
    %c2_i32_25 = arith.constant 2 : i32
    %54 = tpu.dynamic_rotate %46 by %c2_i32_25 dim 1 : vector<8x128xf32>, i32 -> vector<8x128xf32>
    %55 = arith.maximumf %54, %24 : vector<8x128xf32>
    %c126_i32_26 = arith.constant 126 : i32
    %56 = tpu.dynamic_rotate %46 by %c126_i32_26 dim 1 : vector<8x128xf32>, i32 -> vector<8x128xf32>
    %57 = arith.maximumf %56, %24 : vector<8x128xf32>
    %58 = arith.addf %55, %57 : vector<8x128xf32>
    %c3_i32_27 = arith.constant 3 : i32
    %59 = tpu.dynamic_rotate %46 by %c3_i32_27 dim 1 : vector<8x128xf32>, i32 -> vector<8x128xf32>
    %60 = arith.maximumf %59, %24 : vector<8x128xf32>
    %61 = arith.addf %38, %60 : vector<8x128xf32>
    %c125_i32_28 = arith.constant 125 : i32
    %62 = tpu.dynamic_rotate %46 by %c125_i32_28 dim 1 : vector<8x128xf32>, i32 -> vector<8x128xf32>
    %63 = arith.maximumf %62, %24 : vector<8x128xf32>
    %64 = arith.addf %61, %63 : vector<8x128xf32>
    %c0_i32_29 = arith.constant 0 : i32
    %c0_i32_30 = arith.constant 0 : i32
    %65 = tpu.memref_slice %arg6[%9, %c0_i32_29, %c0_i32_30] : memref<2x16x128xf32, #tpu.memory_space<vmem>> -> memref<1x16x128xf32, #tpu.memory_space<vmem>>
    %66 = tpu.memref_squeeze %65 : memref<1x16x128xf32, #tpu.memory_space<vmem>> -> memref<16x128xf32, #tpu.memory_space<vmem>>
    %c2 = arith.constant 2 : index
    %c0_31 = arith.constant 0 : index
    %67 = vector.load %66[%c2, %c0_31] : memref<16x128xf32, #tpu.memory_space<vmem>>, vector<8x128xf32>
    %68 = arith.addf %47, %67 : vector<8x128xf32>
    %69 = arith.maximumf %67, %24 : vector<8x128xf32>
    %c1_i32_32 = arith.constant 1 : i32
    %70 = tpu.dynamic_rotate %67 by %c1_i32_32 dim 1 : vector<8x128xf32>, i32 -> vector<8x128xf32>
    %71 = arith.maximumf %70, %24 : vector<8x128xf32>
    %c127_i32_33 = arith.constant 127 : i32
    %72 = tpu.dynamic_rotate %67 by %c127_i32_33 dim 1 : vector<8x128xf32>, i32 -> vector<8x128xf32>
    %73 = arith.maximumf %72, %24 : vector<8x128xf32>
    %74 = arith.addf %71, %73 : vector<8x128xf32>
    %c2_i32_34 = arith.constant 2 : i32
    %75 = tpu.dynamic_rotate %67 by %c2_i32_34 dim 1 : vector<8x128xf32>, i32 -> vector<8x128xf32>
    %76 = arith.maximumf %75, %24 : vector<8x128xf32>
    %77 = arith.addf %53, %76 : vector<8x128xf32>
    %c126_i32_35 = arith.constant 126 : i32
    %78 = tpu.dynamic_rotate %67 by %c126_i32_35 dim 1 : vector<8x128xf32>, i32 -> vector<8x128xf32>
    %79 = arith.maximumf %78, %24 : vector<8x128xf32>
    %80 = arith.addf %77, %79 : vector<8x128xf32>
    %c3_i32_36 = arith.constant 3 : i32
    %81 = tpu.dynamic_rotate %67 by %c3_i32_36 dim 1 : vector<8x128xf32>, i32 -> vector<8x128xf32>
    %82 = arith.maximumf %81, %24 : vector<8x128xf32>
    %83 = arith.addf %33, %82 : vector<8x128xf32>
    %c125_i32_37 = arith.constant 125 : i32
    %84 = tpu.dynamic_rotate %67 by %c125_i32_37 dim 1 : vector<8x128xf32>, i32 -> vector<8x128xf32>
    %85 = arith.maximumf %84, %24 : vector<8x128xf32>
    %86 = arith.addf %83, %85 : vector<8x128xf32>
    %87 = arith.addf %68, %24 : vector<8x128xf32>
    %c1_i32_38 = arith.constant 1 : i32
    %88 = tpu.dynamic_rotate %24 by %c1_i32_38 dim 1 : vector<8x128xf32>, i32 -> vector<8x128xf32>
    %89 = arith.maximumf %88, %24 : vector<8x128xf32>
    %90 = arith.addf %69, %89 : vector<8x128xf32>
    %c127_i32_39 = arith.constant 127 : i32
    %91 = tpu.dynamic_rotate %24 by %c127_i32_39 dim 1 : vector<8x128xf32>, i32 -> vector<8x128xf32>
    %92 = arith.maximumf %91, %24 : vector<8x128xf32>
    %93 = arith.addf %90, %92 : vector<8x128xf32>
    %c2_i32_40 = arith.constant 2 : i32
    %94 = tpu.dynamic_rotate %24 by %c2_i32_40 dim 1 : vector<8x128xf32>, i32 -> vector<8x128xf32>
    %95 = arith.maximumf %94, %24 : vector<8x128xf32>
    %96 = arith.addf %48, %95 : vector<8x128xf32>
    %c126_i32_41 = arith.constant 126 : i32
    %97 = tpu.dynamic_rotate %24 by %c126_i32_41 dim 1 : vector<8x128xf32>, i32 -> vector<8x128xf32>
    %98 = arith.maximumf %97, %24 : vector<8x128xf32>
    %99 = arith.addf %96, %98 : vector<8x128xf32>
    %c3_i32_42 = arith.constant 3 : i32
    %100 = tpu.dynamic_rotate %24 by %c3_i32_42 dim 1 : vector<8x128xf32>, i32 -> vector<8x128xf32>
    %101 = arith.maximumf %100, %24 : vector<8x128xf32>
    %102 = arith.addf %28, %101 : vector<8x128xf32>
    %c125_i32_43 = arith.constant 125 : i32
    %103 = tpu.dynamic_rotate %24 by %c125_i32_43 dim 1 : vector<8x128xf32>, i32 -> vector<8x128xf32>
    %104 = arith.maximumf %103, %24 : vector<8x128xf32>
    %105 = arith.addf %102, %104 : vector<8x128xf32>
    %c0_i32_44 = arith.constant 0 : i32
    %c0_i32_45 = arith.constant 0 : i32
    %106 = tpu.memref_slice %arg6[%9, %c0_i32_44, %c0_i32_45] : memref<2x16x128xf32, #tpu.memory_space<vmem>> -> memref<1x16x128xf32, #tpu.memory_space<vmem>>
    %107 = tpu.memref_squeeze %106 : memref<1x16x128xf32, #tpu.memory_space<vmem>> -> memref<16x128xf32, #tpu.memory_space<vmem>>
    %c4 = arith.constant 4 : index
    %c0_46 = arith.constant 0 : index
    %108 = vector.load %107[%c4, %c0_46] : memref<16x128xf32, #tpu.memory_space<vmem>>, vector<8x128xf32>
    %109 = arith.addf %87, %108 : vector<8x128xf32>
    %110 = arith.maximumf %108, %24 : vector<8x128xf32>
    %111 = arith.addf %93, %110 : vector<8x128xf32>
    %c1_i32_47 = arith.constant 1 : i32
    %112 = tpu.dynamic_rotate %108 by %c1_i32_47 dim 1 : vector<8x128xf32>, i32 -> vector<8x128xf32>
    %113 = arith.maximumf %112, %24 : vector<8x128xf32>
    %114 = arith.addf %74, %113 : vector<8x128xf32>
    %c127_i32_48 = arith.constant 127 : i32
    %115 = tpu.dynamic_rotate %108 by %c127_i32_48 dim 1 : vector<8x128xf32>, i32 -> vector<8x128xf32>
    %116 = arith.maximumf %115, %24 : vector<8x128xf32>
    %117 = arith.addf %114, %116 : vector<8x128xf32>
    %c2_i32_49 = arith.constant 2 : i32
    %118 = tpu.dynamic_rotate %108 by %c2_i32_49 dim 1 : vector<8x128xf32>, i32 -> vector<8x128xf32>
    %119 = arith.maximumf %118, %24 : vector<8x128xf32>
    %120 = arith.addf %80, %119 : vector<8x128xf32>
    %c126_i32_50 = arith.constant 126 : i32
    %121 = tpu.dynamic_rotate %108 by %c126_i32_50 dim 1 : vector<8x128xf32>, i32 -> vector<8x128xf32>
    %122 = arith.maximumf %121, %24 : vector<8x128xf32>
    %123 = arith.addf %120, %122 : vector<8x128xf32>
    %c3_i32_51 = arith.constant 3 : i32
    %124 = tpu.dynamic_rotate %108 by %c3_i32_51 dim 1 : vector<8x128xf32>, i32 -> vector<8x128xf32>
    %125 = arith.maximumf %124, %24 : vector<8x128xf32>
    %126 = arith.addf %86, %125 : vector<8x128xf32>
    %c125_i32_52 = arith.constant 125 : i32
    %127 = tpu.dynamic_rotate %108 by %c125_i32_52 dim 1 : vector<8x128xf32>, i32 -> vector<8x128xf32>
    %128 = arith.maximumf %127, %24 : vector<8x128xf32>
    %129 = arith.addf %126, %128 : vector<8x128xf32>
    %c0_i32_53 = arith.constant 0 : i32
    %c0_i32_54 = arith.constant 0 : i32
    %130 = tpu.memref_slice %arg6[%9, %c0_i32_53, %c0_i32_54] : memref<2x16x128xf32, #tpu.memory_space<vmem>> -> memref<1x16x128xf32, #tpu.memory_space<vmem>>
    %131 = tpu.memref_squeeze %130 : memref<1x16x128xf32, #tpu.memory_space<vmem>> -> memref<16x128xf32, #tpu.memory_space<vmem>>
    %c5 = arith.constant 5 : index
    %c0_55 = arith.constant 0 : index
    %132 = vector.load %131[%c5, %c0_55] : memref<16x128xf32, #tpu.memory_space<vmem>>, vector<8x128xf32>
    %133 = arith.addf %109, %132 : vector<8x128xf32>
    %134 = arith.maximumf %132, %24 : vector<8x128xf32>
    %135 = arith.addf %99, %134 : vector<8x128xf32>
    %c1_i32_56 = arith.constant 1 : i32
    %136 = tpu.dynamic_rotate %132 by %c1_i32_56 dim 1 : vector<8x128xf32>, i32 -> vector<8x128xf32>
    %137 = arith.maximumf %136, %24 : vector<8x128xf32>
    %138 = arith.addf %123, %137 : vector<8x128xf32>
    %c127_i32_57 = arith.constant 127 : i32
    %139 = tpu.dynamic_rotate %132 by %c127_i32_57 dim 1 : vector<8x128xf32>, i32 -> vector<8x128xf32>
    %140 = arith.maximumf %139, %24 : vector<8x128xf32>
    %141 = arith.addf %138, %140 : vector<8x128xf32>
    %c2_i32_58 = arith.constant 2 : i32
    %142 = tpu.dynamic_rotate %132 by %c2_i32_58 dim 1 : vector<8x128xf32>, i32 -> vector<8x128xf32>
    %143 = arith.maximumf %142, %24 : vector<8x128xf32>
    %144 = arith.addf %58, %143 : vector<8x128xf32>
    %c126_i32_59 = arith.constant 126 : i32
    %145 = tpu.dynamic_rotate %132 by %c126_i32_59 dim 1 : vector<8x128xf32>, i32 -> vector<8x128xf32>
    %146 = arith.maximumf %145, %24 : vector<8x128xf32>
    %147 = arith.addf %144, %146 : vector<8x128xf32>
    %c3_i32_60 = arith.constant 3 : i32
    %148 = tpu.dynamic_rotate %132 by %c3_i32_60 dim 1 : vector<8x128xf32>, i32 -> vector<8x128xf32>
    %149 = arith.maximumf %148, %24 : vector<8x128xf32>
    %150 = arith.addf %64, %149 : vector<8x128xf32>
    %c125_i32_61 = arith.constant 125 : i32
    %151 = tpu.dynamic_rotate %132 by %c125_i32_61 dim 1 : vector<8x128xf32>, i32 -> vector<8x128xf32>
    %152 = arith.maximumf %151, %24 : vector<8x128xf32>
    %153 = arith.addf %150, %152 : vector<8x128xf32>
    %c0_i32_62 = arith.constant 0 : i32
    %c0_i32_63 = arith.constant 0 : i32
    %154 = tpu.memref_slice %arg6[%9, %c0_i32_62, %c0_i32_63] : memref<2x16x128xf32, #tpu.memory_space<vmem>> -> memref<1x16x128xf32, #tpu.memory_space<vmem>>
    %155 = tpu.memref_squeeze %154 : memref<1x16x128xf32, #tpu.memory_space<vmem>> -> memref<16x128xf32, #tpu.memory_space<vmem>>
    %c6 = arith.constant 6 : index
    %c0_64 = arith.constant 0 : index
    %156 = vector.load %155[%c6, %c0_64] : memref<16x128xf32, #tpu.memory_space<vmem>>, vector<8x128xf32>
    %157 = arith.addf %133, %156 : vector<8x128xf32>
    %158 = arith.maximumf %156, %24 : vector<8x128xf32>
    %159 = arith.addf %105, %158 : vector<8x128xf32>
    %c1_i32_65 = arith.constant 1 : i32
    %160 = tpu.dynamic_rotate %156 by %c1_i32_65 dim 1 : vector<8x128xf32>, i32 -> vector<8x128xf32>
    %161 = arith.maximumf %160, %24 : vector<8x128xf32>
    %162 = arith.addf %129, %161 : vector<8x128xf32>
    %c127_i32_66 = arith.constant 127 : i32
    %163 = tpu.dynamic_rotate %156 by %c127_i32_66 dim 1 : vector<8x128xf32>, i32 -> vector<8x128xf32>
    %164 = arith.maximumf %163, %24 : vector<8x128xf32>
    %165 = arith.addf %162, %164 : vector<8x128xf32>
    %c2_i32_67 = arith.constant 2 : i32
    %166 = tpu.dynamic_rotate %156 by %c2_i32_67 dim 1 : vector<8x128xf32>, i32 -> vector<8x128xf32>
    %167 = arith.maximumf %166, %24 : vector<8x128xf32>
    %168 = arith.addf %153, %167 : vector<8x128xf32>
    %c126_i32_68 = arith.constant 126 : i32
    %169 = tpu.dynamic_rotate %156 by %c126_i32_68 dim 1 : vector<8x128xf32>, i32 -> vector<8x128xf32>
    %170 = arith.maximumf %169, %24 : vector<8x128xf32>
    %171 = arith.addf %168, %170 : vector<8x128xf32>
    %c3_i32_69 = arith.constant 3 : i32
    %172 = tpu.dynamic_rotate %156 by %c3_i32_69 dim 1 : vector<8x128xf32>, i32 -> vector<8x128xf32>
    %173 = arith.maximumf %172, %24 : vector<8x128xf32>
    %174 = arith.addf %43, %173 : vector<8x128xf32>
    %c125_i32_70 = arith.constant 125 : i32
    %175 = tpu.dynamic_rotate %156 by %c125_i32_70 dim 1 : vector<8x128xf32>, i32 -> vector<8x128xf32>
    %176 = arith.maximumf %175, %24 : vector<8x128xf32>
    %177 = arith.addf %174, %176 : vector<8x128xf32>
    %cst = arith.constant -12.1516609 : f32
    %178 = vector.broadcast %cst : f32 to vector<8x128xf32>
    %179 = arith.mulf %24, %178 : vector<8x128xf32>
    %cst_71 = arith.constant 0.123839699 : f32
    %180 = vector.broadcast %cst_71 : f32 to vector<8x128xf32>
    %181 = arith.mulf %180, %111 : vector<8x128xf32>
    %182 = arith.addf %179, %181 : vector<8x128xf32>
    %cst_72 = arith.constant 0.165073067 : f32
    %183 = vector.broadcast %cst_72 : f32 to vector<8x128xf32>
    %184 = arith.mulf %183, %117 : vector<8x128xf32>
    %185 = arith.addf %182, %184 : vector<8x128xf32>
    %cst_73 = arith.constant 0.214707792 : f32
    %186 = vector.broadcast %cst_73 : f32 to vector<8x128xf32>
    %187 = arith.mulf %186, %135 : vector<8x128xf32>
    %188 = arith.addf %185, %187 : vector<8x128xf32>
    %cst_74 = arith.constant 0.23209013 : f32
    %189 = vector.broadcast %cst_74 : f32 to vector<8x128xf32>
    %190 = arith.mulf %189, %141 : vector<8x128xf32>
    %191 = arith.addf %188, %190 : vector<8x128xf32>
    %cst_75 = arith.constant 0.269752502 : f32
    %192 = vector.broadcast %cst_75 : f32 to vector<8x128xf32>
    %193 = arith.mulf %192, %147 : vector<8x128xf32>
    %194 = arith.addf %191, %193 : vector<8x128xf32>
    %cst_76 = arith.constant 0.279188156 : f32
    %195 = vector.broadcast %cst_76 : f32 to vector<8x128xf32>
    %196 = arith.mulf %195, %159 : vector<8x128xf32>
    %197 = arith.addf %194, %196 : vector<8x128xf32>
    %cst_77 = arith.constant 0.287546247 : f32
    %198 = vector.broadcast %cst_77 : f32 to vector<8x128xf32>
    %199 = arith.mulf %198, %165 : vector<8x128xf32>
    %200 = arith.addf %197, %199 : vector<8x128xf32>
    %cst_78 = arith.constant 0.307735622 : f32
    %201 = vector.broadcast %cst_78 : f32 to vector<8x128xf32>
    %202 = arith.mulf %201, %171 : vector<8x128xf32>
    %203 = arith.addf %200, %202 : vector<8x128xf32>
    %cst_79 = arith.constant 3.306100e-01 : f32
    %204 = vector.broadcast %cst_79 : f32 to vector<8x128xf32>
    %205 = arith.mulf %204, %177 : vector<8x128xf32>
    %206 = arith.addf %203, %205 : vector<8x128xf32>
    %c127_i32_80 = arith.constant 127 : i32
    %207 = tpu.dynamic_rotate %157 by %c127_i32_80 dim 1 : vector<8x128xf32>, i32 -> vector<8x128xf32>
    %208 = arith.addf %157, %207 : vector<8x128xf32>
    %c126_i32_81 = arith.constant 126 : i32
    %209 = tpu.dynamic_rotate %208 by %c126_i32_81 dim 1 : vector<8x128xf32>, i32 -> vector<8x128xf32>
    %210 = arith.addf %208, %209 : vector<8x128xf32>
    %c3_i32_82 = arith.constant 3 : i32
    %211 = tpu.dynamic_rotate %210 by %c3_i32_82 dim 1 : vector<8x128xf32>, i32 -> vector<8x128xf32>
    %c127_i32_83 = arith.constant 127 : i32
    %212 = tpu.dynamic_rotate %208 by %c127_i32_83 dim 1 : vector<8x128xf32>, i32 -> vector<8x128xf32>
    %213 = arith.addf %211, %212 : vector<8x128xf32>
    %c125_i32_84 = arith.constant 125 : i32
    %214 = tpu.dynamic_rotate %157 by %c125_i32_84 dim 1 : vector<8x128xf32>, i32 -> vector<8x128xf32>
    %215 = arith.addf %213, %214 : vector<8x128xf32>
    %cst_85 = arith.constant -0.0204081628 : f32
    %216 = vector.broadcast %cst_85 : f32 to vector<8x128xf32>
    %217 = arith.mulf %215, %216 : vector<8x128xf32>
    %218 = math.exp %217 : vector<8x128xf32>
    %c0_86 = arith.constant 0 : index
    %c0_87 = arith.constant 0 : index
    %219 = vector.load %arg3[%c0_86, %c0_87] : memref<8x128xf32, #tpu.memory_space<vmem>>, vector<8x128xf32>
    tpu.vector_store %arg3[%c0_86, %c0_87], %218 {strides = array<i32>} : memref<8x128xf32, #tpu.memory_space<vmem>>, vector<8x128xf32>,
    %c0_88 = arith.constant 0 : index
    %c0_89 = arith.constant 0 : index
    %220 = vector.load %arg4[%c0_88, %c0_89] : memref<8x128xf32, #tpu.memory_space<vmem>>, vector<8x128xf32>
    tpu.vector_store %arg4[%c0_88, %c0_89], %206 {strides = array<i32>} : memref<8x128xf32, #tpu.memory_space<vmem>>, vector<8x128xf32>,
    %c0_90 = arith.constant 0 : index
    %c0_91 = arith.constant 0 : index
    %221 = vector.load %arg1[%c0_90, %c0_91] : memref<8x128xf32, #tpu.memory_space<vmem>>, vector<1x128xf32>
    %222 = tpu.iota {dimensions = array<i32: 0>} : vector<8x128xi32>
    %c8_i32 = arith.constant 8 : i32
    %223 = arith.muli %arg0, %c8_i32 : i32
    %224 = vector.broadcast %223 : i32 to vector<8x128xi32>
    %225 = arith.addi %222, %224 : vector<8x128xi32>
    %c16_i32 = arith.constant 16 : i32
    %226 = vector.broadcast %c16_i32 : i32 to vector<8x128xi32>
    %227 = arith.cmpi slt, %225, %226 : vector<8x128xi32>
    %cst_92 = arith.constant 0.000000e+00 : f32
    %228 = vector.shape_cast %221 : vector<1x128xf32> to vector<1x128xf32>
    %229 = vector.broadcast %228 : vector<1x128xf32> to vector<8x128xf32>
    %230 = vector.broadcast %cst_92 : f32 to vector<8x128xf32>
    %231 = arith.select %227, %229, %230 : vector<8x128xi1>, vector<8x128xf32>
    %cst_93 = arith.constant 1.000000e-01 : f32
    %232 = vector.broadcast %cst_93 : f32 to vector<8x128xf32>
    %233 = arith.mulf %232, %218 : vector<8x128xf32>
    %cst_94 = arith.constant 0.899999976 : f32
    %234 = vector.broadcast %cst_94 : f32 to vector<8x128xf32>
    %235 = arith.mulf %234, %206 : vector<8x128xf32>
    %236 = arith.addf %233, %235 : vector<8x128xf32>
    %237 = arith.mulf %236, %231 : vector<8x128xf32>
    %238 = arith.mulf %237, %237 : vector<8x128xf32>
    %239 = vector.shape_cast %238 : vector<8x128xf32> to vector<1x8x128xf32>
    %cst_95 = arith.constant dense<0.000000e+00> : vector<1xf32>
    %240 = vector.multi_reduction <add>, %239, %cst_95 [1, 2] : vector<1x8x128xf32> to vector<1xf32>
    %241 = vector.shape_cast %240 : vector<1xf32> to vector<1x1x1xf32>
    %242 = vector.extract %241[0, 0, 0] : f32 from vector<1x1x1xf32>
    %243 = vector.broadcast %242 : f32 to vector<8x128xf32>
    %c0_96 = arith.constant 0 : index
    %c0_97 = arith.constant 0 : index
    %244 = vector.load %arg5[%c0_96, %c0_97] : memref<8x128xf32, #tpu.memory_space<vmem>>, vector<8x128xf32>
    tpu.vector_store %arg5[%c0_96, %c0_97], %243 {strides = array<i32>} : memref<8x128xf32, #tpu.memory_space<vmem>>, vector<8x128xf32>,
    return
  }
  func.func @transform_0(%arg0: i32) -> (i32, i32) {
    %c0_i32 = arith.constant 0 : i32
    %c0_i32_0 = arith.constant 0 : i32
    %c0_i32_1 = arith.constant 0 : i32
    return %c0_i32, %c0_i32_0 : i32, i32
  }
  func.func @transform_2(%arg0: i32) -> (i32, i32) {
    %c0_i32 = arith.constant 0 : i32
    %c0_i32_0 = arith.constant 0 : i32
    return %arg0, %c0_i32 : i32, i32
  }
  func.func @transform_3(%arg0: i32) -> (i32, i32) {
    %c0_i32 = arith.constant 0 : i32
    %c0_i32_0 = arith.constant 0 : i32
    return %arg0, %c0_i32 : i32, i32
  }
  func.func @transform_4(%arg0: i32) -> (i32, i32) {
    %c0_i32 = arith.constant 0 : i32
    %c0_i32_0 = arith.constant 0 : i32
    return %arg0, %c0_i32 : i32, i32
  }
}

</mosaic_0001>

<llo_original>
// kernel: tpu_custom_call.1
$region0: #{tpu_custom_call.1}
  #allocation0 [shape = 'u32[]', space=smem, size = 0x4, offset = 0x4, fixed_abs, tag = 'smem constant byte address 0x4 - core index']
  #allocation1 [shape = 'u32[72,128]{1,0:T(1,128)}', space=vmem, size = 0x9000, scoped, tag = 'internal scratch']
  #allocation2 [shape = 'f32[2,16,128]{2,1,0:T(8,128)}', space=vmem, size = 0x4000, scoped, tag = 'scratch operand']
  #allocation3 [shape = 's32[2]{0}', space=sflag, size = 0x8, scoped, tag = 'scratch operand']
  #allocation11 [shape = 's32[]', space=sflag, size = 0x4, offset = 0, fixed_abs, tag = 'sflag constant byte address 0x0 - dummy sync flag']
  #allocation12 [shape = 's32[]', space=sflag, size = 0x4, offset = 0, fixed_abs, tag = 'sflag constant byte address 0x0 - dummy sync flag']
  #allocation13 [shape = 'u32[]', space=smem, size = 0x4, offset = 0x44, fixed_abs, tag = 'smem constant byte address 0x44 - assertion arg 0']
  #allocation14 [shape = 'u32[]', space=smem, size = 0x4, offset = 0x48, fixed_abs, tag = 'smem constant byte address 0x48 - assertion arg 1']
  #allocation15 [shape = 's32[]', space=sflag, size = 0x4, offset = 0, fixed_abs, tag = 'sflag constant byte address 0x0 - dummy sync flag']
  #allocation16 [shape = 's32[]', space=sflag, size = 0x4, offset = 0, fixed_abs, tag = 'sflag constant byte address 0x0 - dummy sync flag']
  %s0 = inlined_call_operand.hbm [shape: f32[8,128], index: 0, kind: input, shape index: {}]
  %s1 = inlined_call_operand.hbm [shape: f32[24,128], index: 1, kind: input, shape index: {}]
  %s2 = inlined_call_operand.hbm [shape: f32[16,128], index: 2, kind: output, shape index: {0}]
  %s3 = inlined_call_operand.hbm [shape: f32[16,128], index: 3, kind: output, shape index: {1}]
  %s4 = inlined_call_operand.hbm [shape: f32[16,128], index: 4, kind: output, shape index: {2}]
  %5 = xla_tuple %s2, %s3, %s4
  %s6 = sld [smem:[#allocation0]]
  $region73: #{tpu_custom_call.1} parent=0
    _
  %s8 = ssub.s32 1, %s6
  %s9 = scalar_select 0, %s8, %s6
  $region1: #{tpu_custom_call.1} parent=0
    #allocation4 [shape = 'u8[4096]{0}', space=vmem, size = 0x1000, scoped, tag = 'input window, operand 0, single buffered']
    #allocation5 [shape = 's32[2]{0}', space=sflag, size = 0x8, scoped, tag = 'scoped memory for tpu_custom_call.1']
    #allocation6 [shape = 's32[2]{0}', space=sflag, size = 0x8, scoped, tag = 'scoped memory for tpu_custom_call.1']
    #allocation7 [shape = 'u8[8192]{0}', space=vmem, size = 0x2000, scoped, tag = 'output window, operand 0']
    #allocation8 [shape = 'u8[8192]{0}', space=vmem, size = 0x2000, scoped, tag = 'output window, operand 1']
    #allocation9 [shape = 's32[2]{0}', space=sflag, size = 0x8, scoped, tag = 'scoped memory for tpu_custom_call.1']
    #allocation10 [shape = 'u8[8192]{0}', space=vmem, size = 0x2000, scoped, tag = 'output window, operand 2']
    %10 = vsyncpa [#allocation5], 0
    %11 = vsyncpa [#allocation6], 0
    %s12 = scalar_lea.sflag [#allocation6], 1
    %13 = vsyncpa %s12, 0
    %14 = vsyncpa [#allocation9], 0
    %s15 = scalar_lea.sflag [#allocation9], 1
    %16 = vsyncpa %s15, 0
    loop: start=0, step=1, limit=4
    $region2: #{tpu_custom_call.1} parent=1 // loop_pre_header
      _
    $region3: #{tpu_custom_call.1} parent=1 // loop_header
      %s18 = sphi 0, %s22
      %p19 = scmp.ge.s32.totalorder %s18, 4
      %s26 = sphi 0, %s26
      %s28 = sphi 0, %s26
      %s29 = sphi 0, %s28
      %s43 = sphi 0, %s29
      %s49 = sphi 0, %s51
      %s52 = sphi 0, %s49
      %s53 = sphi 0, %s52
      %s69 = sphi 0, %s53
      %s75 = sphi 0, %s77
      %s78 = sphi 0, %s75
      %s79 = sphi 0, %s78
      %s95 = sphi 0, %s79
      %s101 = sphi 0, %s103
      %s104 = sphi 0, %s101
      %s105 = sphi 0, %s104
      %s121 = sphi 0, %s105
    $region4: #{tpu_custom_call.1} parent=1 // loop_header_branch
      %21 = sbr.rel (%p19) target = $region8
    $region5: #{tpu_custom_call.1} parent=1 // loop_body
      %s23 = ssub.s32 %s18, 1
      %s24 = ssub.s32 %s18, 2
      %s25 = sadd.s32 %s18, 1
      %s27 = sadd.s32 %s26, 1
      %p30 = scmp.eq.s32.totalorder %s18, 1
      %p31 = scmp.ne.s32.totalorder %s26, %s28
      %p32 = scmp.eq.s32.totalorder %s18, 0
      %p33 = por %p31, %p32
      %p34 = scmp.ne.s32.totalorder %s26, %s28
      %p35 = scmp.eq.s32.totalorder %s23, 1
      %p36 = por %p34, %p35
      %p37 = scmp.ne.s32.totalorder %s28, %s29
      %p38 = scmp.eq.s32.totalorder %s23, 0
      %p39 = por %p37, %p38
      %p40 = scmp.ne.s32.totalorder %s28, %s29
      %p41 = scmp.eq.s32.totalorder %s24, 1
      %p42 = por %p40, %p41
      %p44 = scmp.ne.s32.totalorder %s29, %s43
      %p45 = scmp.eq.s32.totalorder %s24, 0
      %p46 = por %p44, %p45
      %s47 = ssub.s32 %s18, %s25
      %p48 = scmp.eq.s32.totalorder %s47, 0
      %s50 = sadd.s32 %s49, 1
      %s51 = scalar_select %p48, %s49, %s50
      %p54 = pneg %p48
      %p55 = scmp.eq.s32.totalorder %s18, 1
      %p56 = por %p54, %p55
      %p57 = scmp.ne.s32.totalorder %s49, %s52
      %p58 = scmp.eq.s32.totalorder %s18, 0
      %p59 = por %p57, %p58
      %p60 = scmp.ne.s32.totalorder %s49, %s52
      %p61 = scmp.eq.s32.totalorder %s23, 1
      %p62 = por %p60, %p61
      %p63 = scmp.ne.s32.totalorder %s52, %s53
      %p64 = scmp.eq.s32.totalorder %s23, 0
      %p65 = por %p63, %p64
      %p66 = scmp.ne.s32.totalorder %s52, %s53
      %p67 = scmp.eq.s32.totalorder %s24, 1
      %p68 = por %p66, %p67
      %p70 = scmp.ne.s32.totalorder %s53, %s69
      %p71 = scmp.eq.s32.totalorder %s24, 0
      %p72 = por %p70, %p71
      %s73 = ssub.s32 %s18, %s25
      %p74 = scmp.eq.s32.totalorder %s73, 0
      %s76 = sadd.s32 %s75, 1
      %s77 = scalar_select %p74, %s75, %s76
      %p80 = pneg %p74
      %p81 = scmp.eq.s32.totalorder %s18, 1
      %p82 = por %p80, %p81
      %p83 = scmp.ne.s32.totalorder %s75, %s78
      %p84 = scmp.eq.s32.totalorder %s18, 0
      %p85 = por %p83, %p84
      %p86 = scmp.ne.s32.totalorder %s75, %s78
      %p87 = scmp.eq.s32.totalorder %s23, 1
      %p88 = por %p86, %p87
      %p89 = scmp.ne.s32.totalorder %s78, %s79
      %p90 = scmp.eq.s32.totalorder %s23, 0
      %p91 = por %p89, %p90
      %p92 = scmp.ne.s32.totalorder %s78, %s79
      %p93 = scmp.eq.s32.totalorder %s24, 1
      %p94 = por %p92, %p93
      %p96 = scmp.ne.s32.totalorder %s79, %s95
      %p97 = scmp.eq.s32.totalorder %s24, 0
      %p98 = por %p96, %p97
      %s99 = ssub.s32 %s18, %s25
      %p100 = scmp.eq.s32.totalorder %s99, 0
      %s102 = sadd.s32 %s101, 1
      %s103 = scalar_select %p100, %s101, %s102
      %p106 = pneg %p100
      %p107 = scmp.eq.s32.totalorder %s18, 1
      %p108 = por %p106, %p107
      %p109 = scmp.ne.s32.totalorder %s101, %s104
      %p110 = scmp.eq.s32.totalorder %s18, 0
      %p111 = por %p109, %p110
      %p112 = scmp.ne.s32.totalorder %s101, %s104
      %p113 = scmp.eq.s32.totalorder %s23, 1
      %p114 = por %p112, %p113
      %p115 = scmp.ne.s32.totalorder %s104, %s105
      %p116 = scmp.eq.s32.totalorder %s23, 0
      %p117 = por %p115, %p116
      %p118 = scmp.ne.s32.totalorder %s104, %s105
      %p119 = scmp.eq.s32.totalorder %s24, 1
      %p120 = por %p118, %p119
      %p122 = scmp.ne.s32.totalorder %s105, %s121
      %p123 = scmp.eq.s32.totalorder %s24, 0
      %p124 = por %p122, %p123
      %p125 = scmp.le.s32.totalorder 1, %s18
      %p126 = scmp.lt.s32.totalorder %s18, 3
      %p127 = pnand %p125, %p126
      %p128 = pneg %p127
      // Predicated region
      $region9: #{tpu_custom_call.1} parent=5 // pred_check
        _
      $region10: #{tpu_custom_call.1} parent=5 // pred_check_branch
        %130 = sbr.rel (%p127) target = $region12
      $region11: #{tpu_custom_call.1} parent=5 // pred_region
        %s131 = ssub.s32 %s18, 1
        // Predicated region
        $region13: #{tpu_custom_call.1} parent=11 // pred_check
          %p132 = pneg %p39
        $region14: #{tpu_custom_call.1} parent=11 // pred_check_branch
          %134 = sbr.rel (%p132) target = $region16
        $region15: #{tpu_custom_call.1} parent=11 // pred_region
          %136 = vsyncadd [#allocation5], 0
          %s138 = sshll.u32 %s0, 4
          %s139 = int_to_ptr.hbm [resolvable:$true] %s138
          %s140 = sshll.u32 [#allocation4], 4
          %s141 = int_to_ptr.vmem [resolvable:$true] %s140
          %143 = dma.hbm_to_vmem [thread:$0]  %s139, 128, %s141, [#allocation5]
        $region16: #{tpu_custom_call.1} parent=11 // pred_fallthru
          _
      $region12: #{tpu_custom_call.1} parent=5 // pred_fallthru
        _
      %p144 = scmp.lt.s32.totalorder %s18, 2
      // Predicated region
      $region17: #{tpu_custom_call.1} parent=5 // pred_check
        %p145 = pneg %p144
      $region18: #{tpu_custom_call.1} parent=5 // pred_check_branch
        %147 = sbr.rel (%p145) target = $region20
      $region19: #{tpu_custom_call.1} parent=5 // pred_region
        _
      $region20: #{tpu_custom_call.1} parent=5 // pred_fallthru
        _
      %p148 = scmp.le.s32.totalorder 1, %s18
      %p149 = scmp.lt.s32.totalorder %s18, 3
      %p150 = pnand %p148, %p149
      %p151 = pneg %p150
      // Predicated region
      $region21: #{tpu_custom_call.1} parent=5 // pred_check
        _
      $region22: #{tpu_custom_call.1} parent=5 // pred_check_branch
        %153 = sbr.rel (%p150) target = $region24
      $region23: #{tpu_custom_call.1} parent=5 // pred_region
        %s154 = ssub.s32 %s18, 1
        // Predicated region
        $region25: #{tpu_custom_call.1} parent=23 // pred_check
          %p155 = pneg %p39
        $region26: #{tpu_custom_call.1} parent=23 // pred_check_branch
          %157 = sbr.rel (%p155) target = $region28
        $region27: #{tpu_custom_call.1} parent=23 // pred_region
          %159 = dma.done [#allocation5], 128
        $region28: #{tpu_custom_call.1} parent=23 // pred_fallthru
          _
        %p160 = pneg %p39
        %p161 = pneg %p36
        %p162 = pneg %p65
        %p163 = pneg %p62
        %s164 = sand.u32 %s52, 1
        %s165 = scalar_lea.sflag [#allocation6], %s164
        %s166 = sand.u32 %s52, 1
        %s167 = smul.addr %s166, 8
        %s168 = scalar_lea.vmem [#allocation7], %s167
        %p169 = pneg %p91
        %p170 = pneg %p88
        %s171 = sand.u32 %s23, 1
        %s172 = scalar_lea.sflag [#allocation9], %s171
        %s173 = sand.u32 %s78, 1
        %s174 = smul.addr %s173, 8
        %s175 = scalar_lea.vmem [#allocation8], %s174
        %p176 = pneg %p117
        %p177 = pneg %p114
        %s178 = sand.u32 %s23, 1
        %s179 = scalar_lea.sflag [#allocation9], %s178
        %s180 = sand.u32 %s104, 1
        %s181 = smul.addr %s180, 8
        %s182 = scalar_lea.vmem [#allocation10], %s181
        %p183 = scmp.lt.s32.totalorder %s23, 0
        %s184 = ssub.s32 0, %s23
        %s185 = scalar_select %p183, %s184, %s23
        %s186 = sand.u32 %s185, 1
        %s187 = ssub.s32 0, %s186
        %s188 = scalar_select %p183, %s187, %s186
        %p189 = scmp.ne.s32.totalorder %s188, 0
        %p190 = scmp.lt.s32.totalorder %s188, 0
        %p191 = pnand %p190, %p189
        %p192 = pneg %p191
        %s193 = sadd.s32 %s188, 2
        %s194 = scalar_select %p192, %s193, %s188
        %p195 = scmp.eq.s32.totalorder %s23, 0
        // Predicated region
        $region29: #{tpu_custom_call.1} parent=23 // pred_check
          %p196 = pneg %p195
        $region30: #{tpu_custom_call.1} parent=23 // pred_check_branch
          %198 = sbr.rel (%p196) target = $region32
        $region31: #{tpu_custom_call.1} parent=23 // pred_region
          %s199 = smul.u32 %s23, 8
          %s200 = scalar_lea.hbm %s1, %s199
          %s201 = smul.u32 %s194, 16
          %s202 = scalar_lea.vmem [#allocation2], %s201
          %s203 = scalar_lea.sflag [#allocation3], %s194
          // Predicated region
          $region33: #{tpu_custom_call.1} parent=31 // pred_check
            _
          $region34: #{tpu_custom_call.1} parent=31 // pred_check_branch
            %205 = sbr.rel target = $region36
          $region35: #{tpu_custom_call.1} parent=31 // pred_region
            %206 = sst [smem:[#allocation13]] [#allocation12]
            %207 = sst [smem:[#allocation14]] [#allocation11]
          $region36: #{tpu_custom_call.1} parent=31 // pred_fallthru
            _
          %209 = shalt.err (0)
          %s211 = sshll.u32 %s200, 4
          %s212 = int_to_ptr.hbm [resolvable:$true] %s211
          %s213 = sshll.u32 %s202, 4
          %s214 = int_to_ptr.vmem [resolvable:$true] %s213
          %216 = dma.hbm_to_vmem [thread:$0]  %s212, 256, %s214, %s203
        $region32: #{tpu_custom_call.1} parent=23 // pred_fallthru
          _
        %s217 = smul.u32 %s194, 16
        %s218 = scalar_lea.vmem [#allocation2], %s217
        %s219 = scalar_lea.sflag [#allocation3], %s194
        %s220 = smul.u32 16, 1
        %s221 = sshll.u32 %s220, 4
        %222 = dma.done %s219, %s221
        %s223 = sadd.s32 %s23, 1
        %p224 = scmp.lt.s32.totalorder %s223, 2
        // Predicated region
        $region37: #{tpu_custom_call.1} parent=23 // pred_check
          %p225 = pneg %p224
        $region38: #{tpu_custom_call.1} parent=23 // pred_check_branch
          %227 = sbr.rel (%p225) target = $region40
        $region39: #{tpu_custom_call.1} parent=23 // pred_region
          %s228 = ssub.s32 1, %s194
          %s229 = smul.u32 %s223, 8
          %s230 = scalar_lea.hbm %s1, %s229
          %s231 = smul.u32 %s228, 16
          %s232 = scalar_lea.vmem [#allocation2], %s231
          %s233 = scalar_lea.sflag [#allocation3], %s228
          // Predicated region
          $region41: #{tpu_custom_call.1} parent=39 // pred_check
            _
          $region42: #{tpu_custom_call.1} parent=39 // pred_check_branch
            %235 = sbr.rel target = $region44
          $region43: #{tpu_custom_call.1} parent=39 // pred_region
            %236 = sst [smem:[#allocation13]] [#allocation16]
            %237 = sst [smem:[#allocation14]] [#allocation15]
          $region44: #{tpu_custom_call.1} parent=39 // pred_fallthru
            _
          %239 = shalt.err (0)
          %s241 = sshll.u32 %s230, 4
          %s242 = int_to_ptr.hbm [resolvable:$true] %s241
          %s243 = sshll.u32 %s232, 4
          %s244 = int_to_ptr.vmem [resolvable:$true] %s243
          %246 = dma.hbm_to_vmem [thread:$0]  %s242, 256, %s244, %s233
        $region40: #{tpu_custom_call.1} parent=23 // pred_fallthru
          _
        %v247 = vld [vmem:[%s218 + $0x3] sm:$0xff]
        %v248 = vld [vmem:[%s218] sm:$0xff]
        %v249 = vmax.f32 %v248, %v247
        %250 = vrot.lane.b32.xlu0 %v248, 1
        %v251 = vpop.permute.xlu0 %250
        %v252 = vmax.f32 %v251, %v247
        %253 = vrot.lane.b32.xlu0 %v248, 127
        %v254 = vpop.permute.xlu0 %253
        %v255 = vmax.f32 %v254, %v247
        %v256 = vadd.f32 %v252, %v255
        %257 = vrot.lane.b32.xlu0 %v248, 2
        %v258 = vpop.permute.xlu0 %257
        %v259 = vmax.f32 %v258, %v247
        %260 = vrot.lane.b32.xlu0 %v248, 126
        %v261 = vpop.permute.xlu0 %260
        %v262 = vmax.f32 %v261, %v247
        %v263 = vadd.f32 %v259, %v262
        %264 = vrot.lane.b32.xlu0 %v248, 3
        %v265 = vpop.permute.xlu0 %264
        %v266 = vmax.f32 %v265, %v247
        %267 = vrot.lane.b32.xlu0 %v248, 125
        %v268 = vpop.permute.xlu0 %267
        %v269 = vmax.f32 %v268, %v247
        %v270 = vadd.f32 %v266, %v269
        %v271 = vld [vmem:[%s218 + $0x1] sm:$0xff]
        %v272 = vadd.f32 %v248, %v271
        %v273 = vmax.f32 %v271, %v247
        %274 = vrot.lane.b32.xlu0 %v271, 1
        %v275 = vpop.permute.xlu0 %274
        %v276 = vmax.f32 %v275, %v247
        %277 = vrot.lane.b32.xlu0 %v271, 127
        %v278 = vpop.permute.xlu0 %277
        %v279 = vmax.f32 %v278, %v247
        %v280 = vadd.f32 %v276, %v279
        %281 = vrot.lane.b32.xlu0 %v271, 2
        %v282 = vpop.permute.xlu0 %281
        %v283 = vmax.f32 %v282, %v247
        %284 = vrot.lane.b32.xlu0 %v271, 126
        %v285 = vpop.permute.xlu0 %284
        %v286 = vmax.f32 %v285, %v247
        %v287 = vadd.f32 %v283, %v286
        %288 = vrot.lane.b32.xlu0 %v271, 3
        %v289 = vpop.permute.xlu0 %288
        %v290 = vmax.f32 %v289, %v247
        %v291 = vadd.f32 %v263, %v290
        %292 = vrot.lane.b32.xlu0 %v271, 125
        %v293 = vpop.permute.xlu0 %292
        %v294 = vmax.f32 %v293, %v247
        %v295 = vadd.f32 %v291, %v294
        %v296 = vld [vmem:[%s218 + $0x2] sm:$0xff]
        %v297 = vadd.f32 %v272, %v296
        %v298 = vmax.f32 %v296, %v247
        %299 = vrot.lane.b32.xlu0 %v296, 1
        %v300 = vpop.permute.xlu0 %299
        %v301 = vmax.f32 %v300, %v247
        %302 = vrot.lane.b32.xlu0 %v296, 127
        %v303 = vpop.permute.xlu0 %302
        %v304 = vmax.f32 %v303, %v247
        %v305 = vadd.f32 %v301, %v304
        %306 = vrot.lane.b32.xlu0 %v296, 2
        %v307 = vpop.permute.xlu0 %306
        %v308 = vmax.f32 %v307, %v247
        %v309 = vadd.f32 %v280, %v308
        %310 = vrot.lane.b32.xlu0 %v296, 126
        %v311 = vpop.permute.xlu0 %310
        %v312 = vmax.f32 %v311, %v247
        %v313 = vadd.f32 %v309, %v312
        %314 = vrot.lane.b32.xlu0 %v296, 3
        %v315 = vpop.permute.xlu0 %314
        %v316 = vmax.f32 %v315, %v247
        %v317 = vadd.f32 %v256, %v316
        %318 = vrot.lane.b32.xlu0 %v296, 125
        %v319 = vpop.permute.xlu0 %318
        %v320 = vmax.f32 %v319, %v247
        %v321 = vadd.f32 %v317, %v320
        %v322 = vadd.f32 %v297, %v247
        %323 = vrot.lane.b32.xlu0 %v247, 1
        %v324 = vpop.permute.xlu0 %323
        %v325 = vmax.f32 %v324, %v247
        %v326 = vadd.f32 %v298, %v325
        %327 = vrot.lane.b32.xlu0 %v247, 127
        %v328 = vpop.permute.xlu0 %327
        %v329 = vmax.f32 %v328, %v247
        %v330 = vadd.f32 %v326, %v329
        %331 = vrot.lane.b32.xlu0 %v247, 2
        %v332 = vpop.permute.xlu0 %331
        %v333 = vmax.f32 %v332, %v247
        %v334 = vadd.f32 %v273, %v333
        %335 = vrot.lane.b32.xlu0 %v247, 126
        %v336 = vpop.permute.xlu0 %335
        %v337 = vmax.f32 %v336, %v247
        %v338 = vadd.f32 %v334, %v337
        %339 = vrot.lane.b32.xlu0 %v247, 3
        %v340 = vpop.permute.xlu0 %339
        %v341 = vmax.f32 %v340, %v247
        %v342 = vadd.f32 %v249, %v341
        %343 = vrot.lane.b32.xlu0 %v247, 125
        %v344 = vpop.permute.xlu0 %343
        %v345 = vmax.f32 %v344, %v247
        %v346 = vadd.f32 %v342, %v345
        %v347 = vld [vmem:[%s218 + $0x4] sm:$0xff]
        %v348 = vadd.f32 %v322, %v347
        %v349 = vmax.f32 %v347, %v247
        %v350 = vadd.f32 %v330, %v349
        %351 = vrot.lane.b32.xlu0 %v347, 1
        %v352 = vpop.permute.xlu0 %351
        %v353 = vmax.f32 %v352, %v247
        %v354 = vadd.f32 %v305, %v353
        %355 = vrot.lane.b32.xlu0 %v347, 127
        %v356 = vpop.permute.xlu0 %355
        %v357 = vmax.f32 %v356, %v247
        %v358 = vadd.f32 %v354, %v357
        %359 = vrot.lane.b32.xlu0 %v347, 2
        %v360 = vpop.permute.xlu0 %359
        %v361 = vmax.f32 %v360, %v247
        %v362 = vadd.f32 %v313, %v361
        %363 = vrot.lane.b32.xlu0 %v347, 126
        %v364 = vpop.permute.xlu0 %363
        %v365 = vmax.f32 %v364, %v247
        %v366 = vadd.f32 %v362, %v365
        %367 = vrot.lane.b32.xlu0 %v347, 3
        %v368 = vpop.permute.xlu0 %367
        %v369 = vmax.f32 %v368, %v247
        %v370 = vadd.f32 %v321, %v369
        %371 = vrot.lane.b32.xlu0 %v347, 125
        %v372 = vpop.permute.xlu0 %371
        %v373 = vmax.f32 %v372, %v247
        %v374 = vadd.f32 %v370, %v373
        %v375 = vld [vmem:[%s218 + $0x5] sm:$0xff]
        %v376 = vadd.f32 %v348, %v375
        %v377 = vmax.f32 %v375, %v247
        %v378 = vadd.f32 %v338, %v377
        %379 = vrot.lane.b32.xlu0 %v375, 1
        %v380 = vpop.permute.xlu0 %379
        %v381 = vmax.f32 %v380, %v247
        %v382 = vadd.f32 %v366, %v381
        %383 = vrot.lane.b32.xlu0 %v375, 127
        %v384 = vpop.permute.xlu0 %383
        %v385 = vmax.f32 %v384, %v247
        %v386 = vadd.f32 %v382, %v385
        %387 = vrot.lane.b32.xlu0 %v375, 2
        %v388 = vpop.permute.xlu0 %387
        %v389 = vmax.f32 %v388, %v247
        %v390 = vadd.f32 %v287, %v389
        %391 = vrot.lane.b32.xlu0 %v375, 126
        %v392 = vpop.permute.xlu0 %391
        %v393 = vmax.f32 %v392, %v247
        %v394 = vadd.f32 %v390, %v393
        %395 = vrot.lane.b32.xlu0 %v375, 3
        %v396 = vpop.permute.xlu0 %395
        %v397 = vmax.f32 %v396, %v247
        %v398 = vadd.f32 %v295, %v397
        %399 = vrot.lane.b32.xlu0 %v375, 125
        %v400 = vpop.permute.xlu0 %399
        %v401 = vmax.f32 %v400, %v247
        %v402 = vadd.f32 %v398, %v401
        %v403 = vld [vmem:[%s218 + $0x6] sm:$0xff]
        %v404 = vadd.f32 %v376, %v403
        %v405 = vmax.f32 %v403, %v247
        %v406 = vadd.f32 %v346, %v405
        %407 = vrot.lane.b32.xlu0 %v403, 1
        %v408 = vpop.permute.xlu0 %407
        %v409 = vmax.f32 %v408, %v247
        %v410 = vadd.f32 %v374, %v409
        %411 = vrot.lane.b32.xlu0 %v403, 127
        %v412 = vpop.permute.xlu0 %411
        %v413 = vmax.f32 %v412, %v247
        %v414 = vadd.f32 %v410, %v413
        %415 = vrot.lane.b32.xlu0 %v403, 2
        %v416 = vpop.permute.xlu0 %415
        %v417 = vmax.f32 %v416, %v247
        %v418 = vadd.f32 %v402, %v417
        %419 = vrot.lane.b32.xlu0 %v403, 126
        %v420 = vpop.permute.xlu0 %419
        %v421 = vmax.f32 %v420, %v247
        %v422 = vadd.f32 %v418, %v421
        %423 = vrot.lane.b32.xlu0 %v403, 3
        %v424 = vpop.permute.xlu0 %423
        %v425 = vmax.f32 %v424, %v247
        %v426 = vadd.f32 %v270, %v425
        %427 = vrot.lane.b32.xlu0 %v403, 125
        %v428 = vpop.permute.xlu0 %427
        %v429 = vmax.f32 %v428, %v247
        %v430 = vadd.f32 %v426, %v429
        %v431 = vmul.f32 %v247, -12.151661
        %v432 = vmul.f32 %v350, 0.1238397
        %v433 = vadd.f32 %v431, %v432
        %v434 = vmul.f32 %v358, 0.16507307
        %v435 = vadd.f32 %v433, %v434
        %v436 = vmul.f32 %v378, 0.21470779
        %v437 = vadd.f32 %v435, %v436
        %v438 = vmul.f32 %v386, 0.23209013
        %v439 = vadd.f32 %v437, %v438
        %v440 = vmul.f32 %v394, 0.2697525
        %v441 = vadd.f32 %v439, %v440
        %v442 = vmul.f32 %v406, 0.27918816
        %v443 = vadd.f32 %v441, %v442
        %v444 = vmul.f32 %v414, 0.28754625
        %v445 = vadd.f32 %v443, %v444
        %v446 = vmul.f32 %v422, 0.30773562
        %v447 = vadd.f32 %v445, %v446
        %v448 = vmul.f32 %v430, 0.33061
        %v449 = vadd.f32 %v447, %v448
        %450 = vrot.lane.b32.xlu0 %v404, 127
        %v451 = vpop.permute.xlu0 %450
        %v452 = vadd.f32 %v404, %v451
        %453 = vrot.lane.b32.xlu0 %v452, 126
        %v454 = vpop.permute.xlu0 %453
        %v455 = vadd.f32 %v452, %v454
        %456 = vrot.lane.b32.xlu0 %v455, 3
        %v457 = vpop.permute.xlu0 %456
        %458 = vrot.lane.b32.xlu0 %v452, 127
        %v459 = vpop.permute.xlu0 %458
        %v460 = vadd.f32 %v457, %v459
        %461 = vrot.lane.b32.xlu0 %v404, 125
        %v462 = vpop.permute.xlu0 %461
        %v463 = vadd.f32 %v460, %v462
        %v464 = vmul.f32 %v463, -0.020408163
        %v465 = vmul.f32 %v464, 1.442695
        %v466 = vpow.pop %v465
        %467 = vst [vmem:[%s168] sm:$0xff] %v466
        %468 = vst [vmem:[%s175] sm:$0xff] %v449
        %v469 = vld [vmem:[#allocation4] sm:$0x1]
        %v470 = vlaneseq
        %v471 = vshrl.u32 %v470, 7
        %s472 = smul.u32 %s23, 8
        %v473 = vstv %s472
        %v474 = vadd.s32 %v471, %v473
        %vm475 = vcmp.lt.s32.totalorder %v474, 16
        %v476 = vperm.slane %v469, 0
        %v477 = vsel %vm475, %v476, 0.0
        %v478 = vmul.f32 %v466, 0.1
        %v479 = vmul.f32 %v449, 0.9
        %v480 = vadd.f32 %v478, %v479
        %v481 = vmul.f32 %v480, %v477
        %v482 = vmul.f32 %v481, %v481
        %483 = vadd.xlane.f32.xlu0 %v482
        %v484 = vpop.xlane.xlu0 %483
        %v485 = vrot.slane %v484, 4
        %v486 = vadd.f32 %v484, %v485
        %v487 = vrot.slane %v486, 2
        %v488 = vadd.f32 %v486, %v487
        %v489 = vrot.slane %v488, 1
        %v490 = vadd.f32 %v488, %v489
        %s491 = vtos %v490
        %v492 = vstv %s491
        %493 = vst [vmem:[%s182] sm:$0xff] %v492
        %s494 = sand.u32 %s52, 1
        %s495 = scalar_lea.sflag [#allocation6], %s494
        %s496 = sand.u32 %s52, 1
        %s497 = smul.addr %s496, 8
        %s498 = scalar_lea.vmem [#allocation7], %s497
        %s499 = sand.u32 %s23, 1
        %s500 = scalar_lea.sflag [#allocation9], %s499
        %s501 = sand.u32 %s78, 1
        %s502 = smul.addr %s501, 8
        %s503 = scalar_lea.vmem [#allocation8], %s502
        %s504 = sand.u32 %s23, 1
        %s505 = scalar_lea.sflag [#allocation9], %s504
        %s506 = sand.u32 %s104, 1
        %s507 = smul.addr %s506, 8
        %s508 = scalar_lea.vmem [#allocation10], %s507
        // Predicated region
        $region45: #{tpu_custom_call.1} parent=23 // pred_check
          %p509 = pneg %p62
        $region46: #{tpu_custom_call.1} parent=23 // pred_check_branch
          %511 = sbr.rel (%p509) target = $region48
        $region47: #{tpu_custom_call.1} parent=23 // pred_region
          %513 = vsyncadd %s495, 0
          %s514 = smul.addr %s23, 8
          %s515 = scalar_lea.hbm %s2, %s514
          %s517 = sshll.u32 %s498, 4
          %s518 = int_to_ptr.vmem [resolvable:$true] %s517
          %s519 = sshll.u32 %s515, 4
          %s520 = int_to_ptr.hbm [resolvable:$true] %s519
          %522 = dma.vmem_to_hbm [thread:$0]  %s518, 128, %s520, %s495
        $region48: #{tpu_custom_call.1} parent=23 // pred_fallthru
          _
        // Predicated region
        $region49: #{tpu_custom_call.1} parent=23 // pred_check
          %p523 = pneg %p88
        $region50: #{tpu_custom_call.1} parent=23 // pred_check_branch
          %525 = sbr.rel (%p523) target = $region52
        $region51: #{tpu_custom_call.1} parent=23 // pred_region
          %527 = vsyncadd %s500, 0
          %s528 = smul.addr %s23, 8
          %s529 = scalar_lea.hbm %s3, %s528
          %s531 = sshll.u32 %s503, 4
          %s532 = int_to_ptr.vmem [resolvable:$true] %s531
          %s533 = sshll.u32 %s529, 4
          %s534 = int_to_ptr.hbm [resolvable:$true] %s533
          %536 = dma.vmem_to_hbm [thread:$0]  %s532, 128, %s534, %s500
        $region52: #{tpu_custom_call.1} parent=23 // pred_fallthru
          _
        // Predicated region
        $region53: #{tpu_custom_call.1} parent=23 // pred_check
          %p537 = pneg %p114
        $region54: #{tpu_custom_call.1} parent=23 // pred_check_branch
          %539 = sbr.rel (%p537) target = $region56
        $region55: #{tpu_custom_call.1} parent=23 // pred_region
          %541 = vsyncadd %s505, 0
          %s542 = smul.addr %s23, 8
          %s543 = scalar_lea.hbm %s4, %s542
          %s545 = sshll.u32 %s508, 4
          %s546 = int_to_ptr.vmem [resolvable:$true] %s545
          %s547 = sshll.u32 %s543, 4
          %s548 = int_to_ptr.hbm [resolvable:$true] %s547
          %550 = dma.vmem_to_hbm [thread:$0]  %s546, 128, %s548, %s505
        $region56: #{tpu_custom_call.1} parent=23 // pred_fallthru
          _
      $region24: #{tpu_custom_call.1} parent=5 // pred_fallthru
        _
      %p551 = scmp.le.s32.totalorder 2, %s18
      // Predicated region
      $region57: #{tpu_custom_call.1} parent=5 // pred_check
        %p552 = pneg %p551
      $region58: #{tpu_custom_call.1} parent=5 // pred_check_branch
        %554 = sbr.rel (%p552) target = $region60
      $region59: #{tpu_custom_call.1} parent=5 // pred_region
        %s555 = ssub.s32 %s18, 2
        // Predicated region
        $region61: #{tpu_custom_call.1} parent=59 // pred_check
          %p556 = pneg %p68
        $region62: #{tpu_custom_call.1} parent=59 // pred_check_branch
          %558 = sbr.rel (%p556) target = $region64
        $region63: #{tpu_custom_call.1} parent=59 // pred_region
          %s559 = sand.u32 %s53, 1
          %s560 = scalar_lea.sflag [#allocation6], %s559
          %s561 = sand.u32 %s53, 1
          %s562 = smul.addr %s561, 8
          %s563 = scalar_lea.vmem [#allocation7], %s562
          %565 = dma.done %s560, 128
        $region64: #{tpu_custom_call.1} parent=59 // pred_fallthru
          _
        // Predicated region
        $region65: #{tpu_custom_call.1} parent=59 // pred_check
          %p566 = pneg %p94
        $region66: #{tpu_custom_call.1} parent=59 // pred_check_branch
          %568 = sbr.rel (%p566) target = $region68
        $region67: #{tpu_custom_call.1} parent=59 // pred_region
          %s569 = sand.u32 %s24, 1
          %s570 = scalar_lea.sflag [#allocation9], %s569
          %s571 = sand.u32 %s79, 1
          %s572 = smul.addr %s571, 8
          %s573 = scalar_lea.vmem [#allocation8], %s572
          %575 = dma.done %s570, 128
        $region68: #{tpu_custom_call.1} parent=59 // pred_fallthru
          _
        // Predicated region
        $region69: #{tpu_custom_call.1} parent=59 // pred_check
          %p576 = pneg %p120
        $region70: #{tpu_custom_call.1} parent=59 // pred_check_branch
          %578 = sbr.rel (%p576) target = $region72
        $region71: #{tpu_custom_call.1} parent=59 // pred_region
          %s579 = sand.u32 %s24, 1
          %s580 = scalar_lea.sflag [#allocation9], %s579
          %s581 = sand.u32 %s105, 1
          %s582 = smul.addr %s581, 8
          %s583 = scalar_lea.vmem [#allocation10], %s582
          %585 = dma.done %s580, 128
        $region72: #{tpu_custom_call.1} parent=59 // pred_fallthru
          _
      $region60: #{tpu_custom_call.1} parent=5 // pred_fallthru
        _
    $region6: #{tpu_custom_call.1} parent=1 // loop_footer
      %s22 = sadd.s32 1, %s18
    $region7: #{tpu_custom_call.1} parent=1 // loop_footer_branch
      %17 = sbr.rel target = $region3
    $region8: #{tpu_custom_call.1} parent=1 // loop_exit
      _
    %586 = vsyncpa [#allocation5], 1
    %s587 = scalar_lea.sflag [#allocation5], 1
    %588 = vsyncpa %s587, 1
    %589 = vsyncpa [#allocation6], 1
    %s590 = scalar_lea.sflag [#allocation6], 1
    %591 = vsyncpa %s590, 1
    %592 = vsyncpa [#allocation9], 1
    %s593 = scalar_lea.sflag [#allocation9], 1
    %594 = vsyncpa %s593, 1
  %595 = vsyncmov [#allocation3]
  %s596 = vpop.sfrf %595
  %p597 = scmp.eq.s32.totalorder %s596, 0
  %p598 = pneg %p597
  %600 = shalt.err (%p598)
  %s601 = scalar_lea.sflag [#allocation3], 1
  %602 = vsyncmov %s601
  %s603 = vpop.sfrf %602
  %p604 = scmp.eq.s32.totalorder %s603, 0
  %p605 = pneg %p604
  %607 = shalt.err (%p605)

</llo_original>
